<compile_context>
chip_gen: v7x
topology: tpu7x:2x2x1
jax: 0.10.0
libtpu: 0.0.40
codegen_flags: <defaults>
</compile_context>

<pallas_src>
import jax
import jax.numpy as jnp
from jax.experimental import pallas as pl
from jax.experimental.pallas import tpu as pltpu

H1, H2 = 128, 64  # hidden sizes fixed by the module


def _value_kernel(x_ref, w1_ref, b1_ref, w2_ref, b2_ref, w3_ref, b3_ref, o_ref):
    # x streamed as f32; cast to bf16 on the VPU inside the kernel.
    x = x_ref[...].astype(jnp.bfloat16)
    # Layer 1: (TB, S)bf16 @ (S, 128)bf16 -> f32 acc, f32 bias + tanh (EUP).
    h1 = jnp.tanh(
        jnp.dot(x, w1_ref[...], preferred_element_type=jnp.float32)
        + b1_ref[...]
    )
    # Layer 2: (TB, 128)bf16 @ (128, 64)bf16 -> f32 acc, f32 bias + tanh.
    h2 = jnp.tanh(
        jnp.dot(h1.astype(jnp.bfloat16), w2_ref[...],
                preferred_element_type=jnp.float32)
        + b2_ref[...]
    )
    # Value head (out_features == 1): keep it off the MXU. Transpose h2 to
    # feature-major (XLU) so the result is a lane-dense (1, TB) row, then VPU
    # multiply with the (64, 1) weight column + sublane reduce + f32 bias.
    h2t = jnp.transpose(h2)                                        # (H2, TB)
    v = jnp.sum(h2t * w3_ref[...], axis=0, keepdims=True) + b3_ref[...]
    o_ref[...] = v.astype(o_ref.dtype)                             # (1, TB)


def _round_up(n, m):
    return ((n + m - 1) // m) * m


def _choose_tile(batch, tile_b):
    """Pick a batch tile: large (amortizes ~0.35us/step grid overhead), a
    multiple of 256 so the (1, TB) output row stays lane-dense, >=2 grid steps
    when the batch allows it (keeps both v7x TensorCores busy), and balanced
    so tail padding stays small."""
    b8 = _round_up(max(batch, 1), 8)
    if b8 <= 256:
        return b8                                   # single small tile
    cap = min(tile_b, _round_up(pl.cdiv(b8, 2), 256))   # >=2 steps, <= tile_b
    n_steps = pl.cdiv(b8, cap)
    return _round_up(pl.cdiv(b8, n_steps), 256)     # balanced, multiple of 256


def value_network_forward(x, params, tile_b=4096):
    """Run the ValueNetwork forward pass as a batch-tiled Pallas kernel.

    x: (B, state_size) float32
    params: dict with w1 (S,128), b1 (1,128), w2 (128,64), b2 (1,64),
            w3 (64,1), b3 (1,1) -- float32, (in, out) layout.
    returns: (B, 1) float32
    """
    B, S = x.shape
    TB = _choose_tile(B, tile_b)
    B_pad = _round_up(B, TB)
    if B_pad != B:
        x = jnp.pad(x, ((0, B_pad - B), (0, 0)))

    # Weights are tiny and VMEM-resident: pre-cast only the matmul weights.
    w1 = params["w1"].astype(jnp.bfloat16)          # (S, 128)
    w2 = params["w2"].astype(jnp.bfloat16)          # (128, 64)
    b1 = params["b1"]                               # (1, 128) f32
    b2 = params["b2"]                               # (1, 64)  f32
    w3 = params["w3"]                               # (64, 1)  f32 (VPU head)
    b3 = params["b3"]                               # (1, 1)   f32

    grid = (B_pad // TB,)
    const = lambda i: (0, 0)                        # weights/biases: resident

    out = pl.pallas_call(
        _value_kernel,
        out_shape=jax.ShapeDtypeStruct((1, B_pad), jnp.float32),
        grid_spec=pltpu.PrefetchScalarGridSpec(
            num_scalar_prefetch=0,
            grid=grid,
            in_specs=[
                pl.BlockSpec((TB, S), lambda i: (i, 0)),   # x: streamed f32 tiles
                pl.BlockSpec((S, H1), const),              # w1
                pl.BlockSpec((1, H1), const),              # b1
                pl.BlockSpec((H1, H2), const),             # w2
                pl.BlockSpec((1, H2), const),              # b2
                pl.BlockSpec((H2, 1), const),              # w3 column
                pl.BlockSpec((1, 1), const),               # b3
            ],
            out_specs=pl.BlockSpec((1, TB), lambda i: (0, i)),  # lane-dense row
        ),
        compiler_params=pltpu.CompilerParams(
            dimension_semantics=("parallel",),
            vmem_limit_bytes=32 * 1024 * 1024,
        ),
    )(x, w1, b1, w2, b2, w3, b3)

    # (1, B_pad) row -> (B, 1) column (layout plumbing only, trivial bytes).
    return out.reshape(-1)[:B].reshape(B, 1)


def init_value_network_params(state_size, seed=0):
    """Deterministic init matching nn.Linear defaults (U[-1/sqrt(fan_in), ..]),
    with value_head.weight *= 0.1 and value_head.bias *= 0.0, as in __init__."""
    key = jax.random.PRNGKey(seed)
    k = jax.random.split(key, 6)

    def linear(kw, kb, fan_in, fan_out):
        bound = 1.0 / jnp.sqrt(jnp.float32(fan_in))
        # stored as (in, out): transpose of PyTorch's (out, in) layout
        w = jax.random.uniform(kw, (fan_in, fan_out), jnp.float32, -bound, bound)
        b = jax.random.uniform(kb, (1, fan_out), jnp.float32, -bound, bound)
        return w, b

    w1, b1 = linear(k[0], k[1], state_size, H1)
    w2, b2 = linear(k[2], k[3], H1, H2)
    w3, b3 = linear(k[4], k[5], H2, 1)
    w3 = w3 * 0.1          # self.value_head.weight.data.mul_(0.1)
    b3 = b3 * 0.0          # self.value_head.bias.data.mul_(0.0)
    return {"w1": w1, "b1": b1, "w2": w2, "b2": b2, "w3": w3, "b3": b3}


def _reference_forward(x, p):
    h1 = jnp.tanh(x @ p["w1"] + p["b1"])
    h2 = jnp.tanh(h1 @ p["w2"] + p["b2"])
    return h2 @ p["w3"] + p["b3"]


if __name__ == "__main__":
    STATE_SIZE = 24   # BipedalWalker-v3 observation size

    params = init_value_network_params(STATE_SIZE, seed=0)
    key = jax.random.PRNGKey(0)

    # Small batch (single full-extent tile).
    x_small = jax.random.normal(key, (4, STATE_SIZE), dtype=jnp.float32)
    out_small = jax.block_until_ready(value_network_forward(x_small, params))
    ref_small = _reference_forward(x_small, params)
    assert out_small.shape == (4, 1)
    # bf16 matmul operands -> relaxed tolerance vs f32 reference
    assert jnp.allclose(out_small, ref_small, atol=3e-2, rtol=3e-2)

    # Ragged batch: exercises multi-step grid, pipelining, tail padding and the
    # lane-dense output path (TB=512, 2 grid steps).
    key2, _ = jax.random.split(key)
    x_big = jax.random.normal(key2, (1000, STATE_SIZE), dtype=jnp.float32)
    out_big = jax.block_until_ready(value_network_forward(x_big, params))
    ref_big = _reference_forward(x_big, params)
    assert out_big.shape == (1000, 1)
    assert jnp.allclose(out_big, ref_big, atol=3e-2, rtol=3e-2)

    print("KERNEL_OK")
</pallas_src>

<mosaic_0001>
module attributes {stable_mosaic.version = 11 : i64} {
  func.func @_value_kernel(%arg0: i32, %arg1: memref<8x24xf32, #tpu.memory_space<vmem>>, %arg2: memref<24x128xbf16, #tpu.memory_space<vmem>>, %arg3: memref<1x128xf32, #tpu.memory_space<vmem>>, %arg4: memref<128x64xbf16, #tpu.memory_space<vmem>>, %arg5: memref<1x64xf32, #tpu.memory_space<vmem>>, %arg6: memref<64x1xf32, #tpu.memory_space<vmem>>, %arg7: memref<1x1xf32, #tpu.memory_space<vmem>>, %arg8: memref<1x8xf32, #tpu.memory_space<vmem>>) attributes {dimension_semantics = [#tpu.dimension_semantics<parallel>], iteration_bounds = array<i64: 1>, scalar_prefetch = 0 : i64, scratch_operands = 0 : i64, tpu.core_type = #tpu.core_type<tc>, window_params = [{transform_indices = @transform_0, window_bounds = array<i64: 8, 24>}, {pipeline_mode = #tpu.pipeline_mode<synchronous>, transform_indices = @transform_1, window_bounds = array<i64: 24, 128>}, {pipeline_mode = #tpu.pipeline_mode<synchronous>, transform_indices = @transform_2, window_bounds = array<i64: 1, 128>}, {pipeline_mode = #tpu.pipeline_mode<synchronous>, transform_indices = @transform_3, window_bounds = array<i64: 128, 64>}, {pipeline_mode = #tpu.pipeline_mode<synchronous>, transform_indices = @transform_4, window_bounds = array<i64: 1, 64>}, {pipeline_mode = #tpu.pipeline_mode<synchronous>, transform_indices = @transform_5, window_bounds = array<i64: 64, 1>}, {pipeline_mode = #tpu.pipeline_mode<synchronous>, transform_indices = @transform_6, window_bounds = array<i64: 1, 1>}, {transform_indices = @transform_7, window_bounds = array<i64: 1, 8>}]} {
    %c0 = arith.constant 0 : index
    %c0_0 = arith.constant 0 : index
    %0 = vector.load %arg1[%c0, %c0_0] : memref<8x24xf32, #tpu.memory_space<vmem>>, vector<8x24xf32>
    %1 = arith.truncf %0 : vector<8x24xf32> to vector<8x24xbf16>
    %c0_1 = arith.constant 0 : index
    %c0_2 = arith.constant 0 : index
    %2 = vector.load %arg2[%c0_1, %c0_2] : memref<24x128xbf16, #tpu.memory_space<vmem>>, vector<24x128xbf16>
    %cst = arith.constant dense<0.000000e+00> : vector<8x128xf32>
    %3 = tpu.matmul %1, %2, %cst {dimension_numbers = #tpu.dot_dimension_numbers<[1], [0], [0], [1], [0, 0, 1, 1], [], []>} : vector<8x24xbf16>, vector<24x128xbf16>, vector<8x128xf32> -> vector<8x128xf32>
    %c0_3 = arith.constant 0 : index
    %c0_4 = arith.constant 0 : index
    %4 = vector.load %arg3[%c0_3, %c0_4] : memref<1x128xf32, #tpu.memory_space<vmem>>, vector<1x128xf32>
    %5 = vector.broadcast %4 : vector<1x128xf32> to vector<8x128xf32>
    %6 = arith.addf %3, %5 : vector<8x128xf32>
    %7 = math.tanh %6 : vector<8x128xf32>
    %8 = arith.truncf %7 : vector<8x128xf32> to vector<8x128xbf16>
    %c0_5 = arith.constant 0 : index
    %c0_6 = arith.constant 0 : index
    %9 = vector.load %arg4[%c0_5, %c0_6] : memref<128x64xbf16, #tpu.memory_space<vmem>>, vector<128x64xbf16>
    %cst_7 = arith.constant dense<0.000000e+00> : vector<8x64xf32>
    %10 = tpu.matmul %8, %9, %cst_7 {dimension_numbers = #tpu.dot_dimension_numbers<[1], [0], [0], [1], [0, 0, 1, 1], [], []>} : vector<8x128xbf16>, vector<128x64xbf16>, vector<8x64xf32> -> vector<8x64xf32>
    %c0_8 = arith.constant 0 : index
    %c0_9 = arith.constant 0 : index
    %11 = vector.load %arg5[%c0_8, %c0_9] : memref<1x64xf32, #tpu.memory_space<vmem>>, vector<1x64xf32>
    %12 = vector.broadcast %11 : vector<1x64xf32> to vector<8x64xf32>
    %13 = arith.addf %10, %12 : vector<8x64xf32>
    %14 = math.tanh %13 : vector<8x64xf32>
    %15 = tpu.transpose %14, [1, 0] : vector<8x64xf32> -> vector<64x8xf32>
    %c0_10 = arith.constant 0 : index
    %c0_11 = arith.constant 0 : index
    %16 = vector.load %arg6[%c0_10, %c0_11] : memref<64x1xf32, #tpu.memory_space<vmem>>, vector<64x1xf32>
    %17 = vector.broadcast %16 : vector<64x1xf32> to vector<64x8xf32>
    %18 = arith.mulf %15, %17 : vector<64x8xf32>
    %cst_12 = arith.constant dense<0.000000e+00> : vector<8xf32>
    %19 = vector.multi_reduction <add>, %18, %cst_12 [0] : vector<64x8xf32> to vector<8xf32>
    %20 = vector.shape_cast %19 : vector<8xf32> to vector<1x8xf32>
    %c0_13 = arith.constant 0 : index
    %c0_14 = arith.constant 0 : index
    %21 = vector.load %arg7[%c0_13, %c0_14] : memref<1x1xf32, #tpu.memory_space<vmem>>, vector<1x1xf32>
    %22 = vector.broadcast %21 : vector<1x1xf32> to vector<1x8xf32>
    %23 = arith.addf %20, %22 : vector<1x8xf32>
    %c0_15 = arith.constant 0 : index
    %c0_16 = arith.constant 0 : index
    %24 = vector.load %arg8[%c0_15, %c0_16] : memref<1x8xf32, #tpu.memory_space<vmem>>, vector<1x8xf32>
    tpu.vector_store %arg8[%c0_15, %c0_16], %23 {strides = array<i32>} : memref<1x8xf32, #tpu.memory_space<vmem>>, vector<1x8xf32>,
    return
  }
  func.func @transform_0(%arg0: i32) -> (i32, i32) {
    %c0_i32 = arith.constant 0 : i32
    %c0_i32_0 = arith.constant 0 : i32
    return %arg0, %c0_i32 : i32, i32
  }
  func.func @transform_1(%arg0: i32) -> (i32, i32) {
    %c0_i32 = arith.constant 0 : i32
    %c0_i32_0 = arith.constant 0 : i32
    %c0_i32_1 = arith.constant 0 : i32
    return %c0_i32, %c0_i32_0 : i32, i32
  }
  func.func @transform_2(%arg0: i32) -> (i32, i32) {
    %c0_i32 = arith.constant 0 : i32
    %c0_i32_0 = arith.constant 0 : i32
    %c0_i32_1 = arith.constant 0 : i32
    return %c0_i32, %c0_i32_0 : i32, i32
  }
  func.func @transform_3(%arg0: i32) -> (i32, i32) {
    %c0_i32 = arith.constant 0 : i32
    %c0_i32_0 = arith.constant 0 : i32
    %c0_i32_1 = arith.constant 0 : i32
    return %c0_i32, %c0_i32_0 : i32, i32
  }
  func.func @transform_4(%arg0: i32) -> (i32, i32) {
    %c0_i32 = arith.constant 0 : i32
    %c0_i32_0 = arith.constant 0 : i32
    %c0_i32_1 = arith.constant 0 : i32
    return %c0_i32, %c0_i32_0 : i32, i32
  }
  func.func @transform_5(%arg0: i32) -> (i32, i32) {
    %c0_i32 = arith.constant 0 : i32
    %c0_i32_0 = arith.constant 0 : i32
    %c0_i32_1 = arith.constant 0 : i32
    return %c0_i32, %c0_i32_0 : i32, i32
  }
  func.func @transform_6(%arg0: i32) -> (i32, i32) {
    %c0_i32 = arith.constant 0 : i32
    %c0_i32_0 = arith.constant 0 : i32
    %c0_i32_1 = arith.constant 0 : i32
    return %c0_i32, %c0_i32_0 : i32, i32
  }
  func.func @transform_7(%arg0: i32) -> (i32, i32) {
    %c0_i32 = arith.constant 0 : i32
    %c0_i32_0 = arith.constant 0 : i32
    return %c0_i32, %arg0 : i32, i32
  }
}

</mosaic_0001>

<llo_original>
// kernel: tpu_custom_call.1
$region0: #{tpu_custom_call.1}
  #allocation0 [shape = 'u32[]', space=smem, size = 0x4, offset = 0x4, fixed_abs, tag = 'smem constant byte address 0x4 - core index']
  #allocation1 [shape = 'u32[144,128]{1,0:T(1,128)}', space=vmem, size = 0x12000, scoped, tag = 'internal scratch']
  #allocation2 [shape = 'f32[1,1]{1,0:T(1,128)S(1)}', space=vmem, size = 0x200, scoped, tag = 'scoped memory for tpu_custom_call.1']
  %s0 = inlined_call_operand.vmem [shape: f32[8,24], index: 0, kind: input, shape index: {}]
  %s1 = inlined_call_operand.vmem [shape: bf16[24,128], index: 1, kind: input, shape index: {}]
  %s2 = inlined_call_operand.vmem [shape: f32[1,128], index: 2, kind: input, shape index: {}]
  %s3 = inlined_call_operand.vmem [shape: bf16[128,64], index: 3, kind: input, shape index: {}]
  %s4 = inlined_call_operand.vmem [shape: f32[1,64], index: 4, kind: input, shape index: {}]
  %s5 = inlined_call_operand.vmem [shape: f32[64,1], index: 5, kind: input, shape index: {}]
  %s6 = inlined_call_operand.<no memory space> [shape: f32[1,1], index: 6, kind: input, shape index: {}]
  %s7 = inlined_call_operand.hbm [shape: f32[1,8], index: 7, kind: output, shape index: {}]
  %s8 = sld [smem:[#allocation0]]
  $region38: #{tpu_custom_call.1} parent=0
    _
  %s10 = ssub.s32 1, %s8
  %s11 = scalar_select 0, %s10, %s8
  %v12 = vstv %s6
  %13 = vst [vmem:[#allocation2] sm:$0x1] %v12
  $region1: #{tpu_custom_call.1} parent=0
    #allocation3 [shape = 'u8[512]{0}', space=vmem, size = 0x400, scoped, tag = 'output window, operand 0, single buffered']
    #allocation4 [shape = 's32[1]{0}', space=sflag, size = 0x4, scoped, tag = 'scoped memory for tpu_custom_call.1']
    %14 = vsyncpa [#allocation4], 0
    // Predicated region
    $region2: #{tpu_custom_call.1} parent=1 // pred_check
      _
    $region3: #{tpu_custom_call.1} parent=1 // pred_check_branch
      %16 = sbr.rel (0) target = $region5
    $region4: #{tpu_custom_call.1} parent=1 // pred_region
      _
    $region5: #{tpu_custom_call.1} parent=1 // pred_fallthru
      _
    // Predicated region
    $region6: #{tpu_custom_call.1} parent=1 // pred_check
      _
    $region7: #{tpu_custom_call.1} parent=1 // pred_check_branch
      %18 = sbr.rel (0) target = $region9
    $region8: #{tpu_custom_call.1} parent=1 // pred_region
      _
    $region9: #{tpu_custom_call.1} parent=1 // pred_fallthru
      _
    // Predicated region
    $region10: #{tpu_custom_call.1} parent=1 // pred_check
      _
    $region11: #{tpu_custom_call.1} parent=1 // pred_check_branch
      %20 = sbr.rel (0) target = $region13
    $region12: #{tpu_custom_call.1} parent=1 // pred_region
      _
    $region13: #{tpu_custom_call.1} parent=1 // pred_fallthru
      _
    // Predicated region
    $region14: #{tpu_custom_call.1} parent=1 // pred_check
      _
    $region15: #{tpu_custom_call.1} parent=1 // pred_check_branch
      %22 = sbr.rel (0) target = $region17
    $region16: #{tpu_custom_call.1} parent=1 // pred_region
      _
    $region17: #{tpu_custom_call.1} parent=1 // pred_fallthru
      _
    // Predicated region
    $region18: #{tpu_custom_call.1} parent=1 // pred_check
      _
    $region19: #{tpu_custom_call.1} parent=1 // pred_check_branch
      %24 = sbr.rel (0) target = $region21
    $region20: #{tpu_custom_call.1} parent=1 // pred_region
      _
    $region21: #{tpu_custom_call.1} parent=1 // pred_fallthru
      _
    // Predicated region
    $region22: #{tpu_custom_call.1} parent=1 // pred_check
      _
    $region23: #{tpu_custom_call.1} parent=1 // pred_check_branch
      %26 = sbr.rel (0) target = $region25
    $region24: #{tpu_custom_call.1} parent=1 // pred_region
      _
    $region25: #{tpu_custom_call.1} parent=1 // pred_fallthru
      _
    // Predicated region
    $region26: #{tpu_custom_call.1} parent=1 // pred_check
      _
    $region27: #{tpu_custom_call.1} parent=1 // pred_check_branch
      %28 = sbr.rel (0) target = $region29
    $region28: #{tpu_custom_call.1} parent=1 // pred_region
      _
    $region29: #{tpu_custom_call.1} parent=1 // pred_fallthru
      _
    %v30 = vld [vmem:[%s0] sm:$0xff]
    %v31 = vpack.c.bf16 %v30, %v30
    %v32 = vld [vmem:[%s1] sm:$0xf]
    %v33 = vld [vmem:[%s1 + $0x4] sm:$0xf]
    %v34 = vld [vmem:[%s1 + $0x8] sm:$0xf]
    %v35 = vld [vmem:[%s2] sm:$0x1]
    %v37 = vlaneseq
    %v38 = vshrl.u32 %v37, 7
    %v39 = vsub.s32 0, %v38
    %v40 = vrot.slane %v35, %v39
    %v45 = vunpack.c.l.b16 %v32
    %v46 = vunpack.c.l.b16 %v33
    %v47 = vunpack.c.l.b16 %v34
    %v48 = vpack.c.b16 %v46, %v45
    %v49 = vpack.c.b16 %v47, %v47
    %vm51 = vcmask 195584
    %v53 = vsel %vm51, %v31, 0
    %vm55 = vcmask 1043456
    %v57 = vsel %vm55, %v49, 0
    %59 = vmatprep.subr.bf16.mxu0 0
    %60 = vmatpush1.bf16.msra.mxu0 %v48
    %61 = vmatprep.subr.bf16.mxu0 0
    %62 = vmatpush1.bf16.msra.mxu0 %v57
    %63 = vmatprep.subr.bf16.mxu0 0
    %64 = vmatpush1.bf16.msra.mxu0 0
    %65 = vmatprep.subr.bf16.mxu0 0
    %66 = vmatpush1.bf16.msra.mxu0 0
    %67 = vmatprep.subr.bf16.mxu0 0
    %68 = vmatpush1.bf16.msra.mxu0 0
    %69 = vmatprep.subr.bf16.mxu0 0
    %70 = vmatpush1.bf16.msra.mxu0 0
    %71 = vmatprep.subr.bf16.mxu0 0
    %72 = vmatpush1.bf16.msra.mxu0 0
    %73 = vmatprep.subr.bf16.mxu0 0
    %74 = vmatpush1.bf16.msra.mxu0 0
    %75 = vmatprep.subr.bf16.mxu0 0
    %76 = vmatpush1.bf16.msra.mxu0 0
    %77 = vmatprep.subr.bf16.mxu0 0
    %78 = vmatpush1.bf16.msra.mxu0 0
    %79 = vmatprep.subr.bf16.mxu0 0
    %80 = vmatpush1.bf16.msra.mxu0 0
    %81 = vmatprep.subr.bf16.mxu0 0
    %82 = vmatpush1.bf16.msra.mxu0 0
    %83 = vmatprep.subr.bf16.mxu0 0
    %84 = vmatpush1.bf16.msra.mxu0 0
    %85 = vmatprep.subr.bf16.mxu0 0
    %86 = vmatpush1.bf16.msra.mxu0 0
    %87 = vmatprep.subr.bf16.mxu0 0
    %88 = vmatpush1.bf16.msra.mxu0 0
    %89 = vmatprep.subr.bf16.mxu0 0
    %90 = vmatpush1.bf16.msra.mxu0 0
    %91 = vmatprep.mubr.bf16.mxu0 0
    %92 = vmatmul.mubr.bf16.gmra.mrb[0].mxu0 %v53
    %v93 = vpop.f32.mrb[0].mxu0
    %v94 = vadd.f32 %v40, %v93
    %v95 = vpop.f32.mrb[0].mxu0
    %v96 = vpop.f32.mrb[0].mxu0
    %v97 = vpop.f32.mrb[0].mxu0
    %98 = vdwg.mxu0
    %v99 = vtanh.pop %v94
    %v100 = vpack.c.bf16 %v99, %v99
    %v101 = vld [vmem:[%s3] sm:$0xf]
    %v102 = vld [vmem:[%s3 + $0x4] sm:$0xf]
    %v103 = vld [vmem:[%s3 + $0x8] sm:$0xf]
    %v104 = vld [vmem:[%s3 + $0xc] sm:$0xf]
    %v105 = vld [vmem:[%s3 + $0x10] sm:$0xf]
    %v106 = vld [vmem:[%s3 + $0x14] sm:$0xf]
    %v107 = vld [vmem:[%s3 + $0x18] sm:$0xf]
    %v108 = vld [vmem:[%s3 + $0x1c] sm:$0xf]
    %v109 = vld [vmem:[%s3 + $0x20] sm:$0xf]
    %v110 = vld [vmem:[%s3 + $0x24] sm:$0xf]
    %v111 = vld [vmem:[%s3 + $0x28] sm:$0xf]
    %v112 = vld [vmem:[%s3 + $0x2c] sm:$0xf]
    %v113 = vld [vmem:[%s3 + $0x30] sm:$0xf]
    %v114 = vld [vmem:[%s3 + $0x34] sm:$0xf]
    %v115 = vld [vmem:[%s3 + $0x38] sm:$0xf]
    %v116 = vld [vmem:[%s3 + $0x3c] sm:$0xf]
    %v117 = vld [vmem:[%s4] sm:$0x1]
    %v119 = vlaneseq
    %v120 = vshrl.u32 %v119, 7
    %v121 = vsub.s32 0, %v120
    %v122 = vrot.slane %v117, %v121
    %v140 = vunpack.c.l.b16 %v101
    %v141 = vunpack.c.l.b16 %v102
    %v142 = vunpack.c.l.b16 %v103
    %v143 = vunpack.c.l.b16 %v104
    %v144 = vunpack.c.l.b16 %v105
    %v145 = vunpack.c.l.b16 %v106
    %v146 = vunpack.c.l.b16 %v107
    %v147 = vunpack.c.l.b16 %v108
    %v148 = vunpack.c.l.b16 %v109
    %v149 = vunpack.c.l.b16 %v110
    %v150 = vunpack.c.l.b16 %v111
    %v151 = vunpack.c.l.b16 %v112
    %v152 = vunpack.c.l.b16 %v113
    %v153 = vunpack.c.l.b16 %v114
    %v154 = vunpack.c.l.b16 %v115
    %v155 = vunpack.c.l.b16 %v116
    %v156 = vpack.c.b16 %v141, %v140
    %v157 = vpack.c.b16 %v143, %v142
    %v158 = vpack.c.b16 %v145, %v144
    %v159 = vpack.c.b16 %v147, %v146
    %v160 = vpack.c.b16 %v149, %v148
    %v161 = vpack.c.b16 %v151, %v150
    %v162 = vpack.c.b16 %v153, %v152
    %v163 = vpack.c.b16 %v155, %v154
    %172 = vmatprep.subr.bf16.mxu0 0
    %173 = vmatpush1.bf16.msra.mxu0 %v156
    %174 = vmatprep.subr.bf16.mxu0 0
    %175 = vmatpush1.bf16.msra.mxu0 %v157
    %176 = vmatprep.subr.bf16.mxu0 0
    %177 = vmatpush1.bf16.msra.mxu0 %v158
    %178 = vmatprep.subr.bf16.mxu0 0
    %179 = vmatpush1.bf16.msra.mxu0 %v159
    %180 = vmatprep.subr.bf16.mxu0 0
    %181 = vmatpush1.bf16.msra.mxu0 %v160
    %182 = vmatprep.subr.bf16.mxu0 0
    %183 = vmatpush1.bf16.msra.mxu0 %v161
    %184 = vmatprep.subr.bf16.mxu0 0
    %185 = vmatpush1.bf16.msra.mxu0 %v162
    %186 = vmatprep.subr.bf16.mxu0 0
    %187 = vmatpush1.bf16.msra.mxu0 %v163
    %188 = vmatprep.subr.bf16.mxu0 0
    %189 = vmatpush1.bf16.msra.mxu0 0
    %190 = vmatprep.subr.bf16.mxu0 0
    %191 = vmatpush1.bf16.msra.mxu0 0
    %192 = vmatprep.subr.bf16.mxu0 0
    %193 = vmatpush1.bf16.msra.mxu0 0
    %194 = vmatprep.subr.bf16.mxu0 0
    %195 = vmatpush1.bf16.msra.mxu0 0
    %196 = vmatprep.subr.bf16.mxu0 0
    %197 = vmatpush1.bf16.msra.mxu0 0
    %198 = vmatprep.subr.bf16.mxu0 0
    %199 = vmatpush1.bf16.msra.mxu0 0
    %200 = vmatprep.subr.bf16.mxu0 0
    %201 = vmatpush1.bf16.msra.mxu0 0
    %202 = vmatprep.subr.bf16.mxu0 0
    %203 = vmatpush1.bf16.msra.mxu0 0
    %204 = vmatprep.mubr.bf16.mxu0 0
    %205 = vmatmul.mubr.bf16.gmra.mrb[0].mxu0 %v100
    %v206 = vpop.f32.mrb[0].mxu0
    %v207 = vadd.f32 %v122, %v206
    %v208 = vpop.f32.mrb[0].mxu0
    %v209 = vpop.f32.mrb[0].mxu0
    %v210 = vpop.f32.mrb[0].mxu0
    %211 = vdwg.mxu0
    %v212 = vtanh.pop %v207
    %213 = vxpose.xlu0.b32.start [1/16] %v212, 128
    %214 = vxpose.xlu0.b32.cont [2/16] 0.0, 128
    %215 = vxpose.xlu0.b32.cont [3/16] 0.0, 128
    %216 = vxpose.xlu0.b32.cont [4/16] 0.0, 128
    %217 = vxpose.xlu0.b32.cont [5/16] 0.0, 128
    %218 = vxpose.xlu0.b32.cont [6/16] 0.0, 128
    %219 = vxpose.xlu0.b32.cont [7/16] 0.0, 128
    %220 = vxpose.xlu0.b32.cont [8/16] 0.0, 128
    %221 = vxpose.xlu0.b32.cont [9/16] 0.0, 128
    %222 = vxpose.xlu0.b32.cont [10/16] 0.0, 128
    %223 = vxpose.xlu0.b32.cont [11/16] 0.0, 128
    %224 = vxpose.xlu0.b32.cont [12/16] 0.0, 128
    %225 = vxpose.xlu0.b32.cont [13/16] 0.0, 128
    %226 = vxpose.xlu0.b32.cont [14/16] 0.0, 128
    %227 = vxpose.xlu0.b32.cont [15/16] 0.0, 128
    %228 = vxpose.xlu0.b32.end [16/16] 0.0, 128
    %v229 = vpop.trf.xlu0
    %v230 = vpop.trf.xlu0
    %v231 = vpop.trf.xlu0
    %v232 = vpop.trf.xlu0
    %v233 = vpop.trf.xlu0
    %v234 = vpop.trf.xlu0
    %v235 = vpop.trf.xlu0
    %v236 = vpop.trf.xlu0
    %v237 = vpop.trf.xlu0
    %v238 = vpop.trf.xlu0
    %v239 = vpop.trf.xlu0
    %v240 = vpop.trf.xlu0
    %v241 = vpop.trf.xlu0
    %v242 = vpop.trf.xlu0
    %v243 = vpop.trf.xlu0
    %v244 = vpop.trf.xlu0
    %v245 = vld [vmem:[%s5] sm:$0xff]
    %v246 = vld [vmem:[%s5 + $0x8] sm:$0xff]
    %v247 = vld [vmem:[%s5 + $0x10] sm:$0xff]
    %v248 = vld [vmem:[%s5 + $0x18] sm:$0xff]
    %v249 = vld [vmem:[%s5 + $0x20] sm:$0xff]
    %v250 = vld [vmem:[%s5 + $0x28] sm:$0xff]
    %v251 = vld [vmem:[%s5 + $0x30] sm:$0xff]
    %v252 = vld [vmem:[%s5 + $0x38] sm:$0xff]
    %254 = vset.pattern.permute.xlu0 0
    %255 = vperm.xlu0 %254, %v245
    %v256 = vpop.permute.xlu0 %255
    %259 = vset.pattern.permute.xlu0 0
    %260 = vperm.xlu0 %259, %v246
    %v261 = vpop.permute.xlu0 %260
    %264 = vset.pattern.permute.xlu0 0
    %265 = vperm.xlu0 %264, %v247
    %v266 = vpop.permute.xlu0 %265
    %269 = vset.pattern.permute.xlu0 0
    %270 = vperm.xlu0 %269, %v248
    %v271 = vpop.permute.xlu0 %270
    %274 = vset.pattern.permute.xlu0 0
    %275 = vperm.xlu0 %274, %v249
    %v276 = vpop.permute.xlu0 %275
    %279 = vset.pattern.permute.xlu0 0
    %280 = vperm.xlu0 %279, %v250
    %v281 = vpop.permute.xlu0 %280
    %284 = vset.pattern.permute.xlu0 0
    %285 = vperm.xlu0 %284, %v251
    %v286 = vpop.permute.xlu0 %285
    %289 = vset.pattern.permute.xlu0 0
    %290 = vperm.xlu0 %289, %v252
    %v291 = vpop.permute.xlu0 %290
    %v293 = vmul.f32 %v229, %v256
    %v294 = vmul.f32 %v230, %v261
    %v295 = vmul.f32 %v231, %v266
    %v296 = vmul.f32 %v232, %v271
    %v297 = vmul.f32 %v233, %v276
    %v298 = vmul.f32 %v234, %v281
    %v299 = vmul.f32 %v235, %v286
    %v300 = vmul.f32 %v236, %v291
    %vm301 = vcmask 64512
    %v302 = vsel %vm301, %v293, 0.0
    %v303 = vsel %vm301, %v294, 0.0
    %v304 = vadd.f32 %v302, %v303
    %v305 = vsel %vm301, %v295, 0.0
    %v306 = vadd.f32 %v304, %v305
    %v307 = vsel %vm301, %v296, 0.0
    %v308 = vadd.f32 %v306, %v307
    %v309 = vsel %vm301, %v297, 0.0
    %v310 = vadd.f32 %v308, %v309
    %v311 = vsel %vm301, %v298, 0.0
    %v312 = vadd.f32 %v310, %v311
    %v313 = vsel %vm301, %v299, 0.0
    %v314 = vadd.f32 %v312, %v313
    %v315 = vsel %vm301, %v300, 0.0
    %v316 = vadd.f32 %v314, %v315
    %v317 = vrot.slane %v316, 4
    %v318 = vadd.f32 %v316, %v317
    %v319 = vrot.slane %v318, 2
    %v320 = vadd.f32 %v318, %v319
    %v321 = vrot.slane %v320, 1
    %v322 = vadd.f32 %v320, %v321
    %v323 = vld [vmem:[#allocation2] sm:$0x1]
    %325 = vset.pattern.permute.xlu0 0
    %326 = vperm.xlu0 %325, %v323
    %v327 = vpop.permute.xlu0 %326
    %v329 = vlaneseq
    %v330 = vshrl.u32 %v329, 7
    %v331 = vsub.s32 0, %v330
    %v332 = vrot.slane %v327, %v331
    %v333 = vadd.f32 %v322, %v332
    %vm334 = vcmask 57344
    %335 = vst.msk [vmem:[#allocation3] sm:$0x1] %vm334, %v333
    // Predicated region
    $region30: #{tpu_custom_call.1} parent=1 // pred_check
      _
    $region31: #{tpu_custom_call.1} parent=1 // pred_check_branch
      %337 = sbr.rel (0) target = $region33
    $region32: #{tpu_custom_call.1} parent=1 // pred_region
      %s339 = ssub.s32 16, 16
      %340 = vsyncadd [#allocation4], %s339
      %s342 = sshll.u32 [#allocation3], 4
      %s343 = int_to_ptr.vmem [resolvable:$true] %s342
      %345 = dma.vmem_to_hbm [thread:$0]  %s343, 16, %s7, [#allocation4]
    $region33: #{tpu_custom_call.1} parent=1 // pred_fallthru
      _
    // Predicated region
    $region34: #{tpu_custom_call.1} parent=1 // pred_check
      _
    $region35: #{tpu_custom_call.1} parent=1 // pred_check_branch
      %347 = sbr.rel (0) target = $region37
    $region36: #{tpu_custom_call.1} parent=1 // pred_region
      %348 = dma.done [#allocation4], 16
    $region37: #{tpu_custom_call.1} parent=1 // pred_fallthru
      _
    %349 = vsyncpa [#allocation4], 1

</llo_original>
